<compile_context>
chip_gen: v5e
topology: v5e:2x2
jax: 0.10.0
libtpu: 0.0.40
codegen_flags: <defaults>
</compile_context>

<pallas_src>
import jax
import jax.numpy as jnp
from jax.experimental import pallas as pl
from jax.experimental.pallas import tpu as pltpu


def _mlp_kernel(x_ref, w1_ref, b1_ref, w2_ref, b2_ref, o_ref):
    # Cast x to bf16 on the VPU (free under the DMA) right before the MXU matmul.
    x = x_ref[...].astype(jnp.bfloat16)
    # First linear: bf16 MXU matmul, f32 accumulation; bias-add + ReLU in f32.
    h = jnp.dot(x, w1_ref[...], preferred_element_type=jnp.float32)
    h = jnp.maximum(h + b1_ref[...], 0.0)            # b1 is (1, hidden) -> sublane broadcast
    # Second linear: round ReLU output to bf16 for the MXU, accumulate in f32.
    y = jnp.dot(h.astype(w2_ref.dtype), w2_ref[...],
                preferred_element_type=jnp.float32)
    o_ref[...] = (y + b2_ref[...]).astype(o_ref.dtype)   # store in bf16 (out dtype)


def _round_up(v, m):
    return (v + m - 1) // m * m


def _auto_batch_tile(B, d_in, hidden, d_out, requested, x_bytes,
                     vmem_budget=20 * 1024 * 1024):
    """Largest batch tile (multiple of 16) that fits the VMEM budget, capped at `requested`."""
    # Per-row working set: double-buffered x and out tiles, f32 h, bf16 cast of x, f32 y.
    per_row = 2 * d_in * x_bytes + 2 * d_out * 2 + hidden * 4 + d_in * 2 + d_out * 4
    # Fixed cost: double-buffered bf16 weights + f32 biases (constant index maps).
    fixed = 2 * ((d_in * hidden + hidden * d_out) * 2 + (hidden + d_out) * 4)
    avail = max(vmem_budget - fixed, 2 * 1024 * 1024)
    tb = min(int(requested), max(avail // max(per_row, 1), 16))
    tb = max(16, (tb // 16) * 16)
    if tb >= B:
        tb = B      # full-extent batch block (always a legal block dim)
    return tb


def prepare_params(w1, b1, w2, b2):
    """One-time (out-of-the-hot-path) prep: bf16 weights, f32 row-vector biases."""
    w1p = w1.astype(jnp.bfloat16)
    w2p = w2.astype(jnp.bfloat16)
    b1p = b1.reshape(1, -1).astype(jnp.float32)
    b2p = b2.reshape(1, -1).astype(jnp.float32)
    return w1p, b1p, w2p, b2p


def attention_mlp(x, w1p, b1p, w2p, b2p, *, batch_tile=1024):
    """x: [B, input_dim] (any float dtype); prepared params from prepare_params().
    Returns [B, output_dim] in bfloat16 (callers needing f32 can cast downstream)."""
    B, d_in = x.shape
    hidden = w1p.shape[1]
    d_out = w2p.shape[1]

    tb = _auto_batch_tile(B, d_in, hidden, d_out, batch_tile, x.dtype.itemsize)
    grid = (pl.cdiv(B, tb),)

    out = pl.pallas_call(
        _mlp_kernel,
        out_shape=jax.ShapeDtypeStruct((B, d_out), jnp.bfloat16),
        grid=grid,
        in_specs=[
            pl.BlockSpec((tb, d_in), lambda b: (b, 0)),        # batch-tiled activations
            pl.BlockSpec((d_in, hidden), lambda b: (0, 0)),    # weights: VMEM-resident
            pl.BlockSpec((1, hidden), lambda b: (0, 0)),
            pl.BlockSpec((hidden, d_out), lambda b: (0, 0)),
            pl.BlockSpec((1, d_out), lambda b: (0, 0)),
        ],
        out_specs=pl.BlockSpec((tb, d_out), lambda b: (b, 0)),  # unpadded output: min HBM bytes
        compiler_params=pltpu.CompilerParams(
            dimension_semantics=("parallel",),                  # pipelining + v7x 2-TC sharding
            vmem_limit_bytes=32 * 1024 * 1024,                   # raise v5e's 16 MiB default
        ),
    )(x, w1p, b1p, w2p, b2p)

    return out


def init_params(key, input_dim, output_dim, dtype=jnp.float32):
    """Deterministic init mimicking PyTorch Linear's U(-1/sqrt(fan_in), 1/sqrt(fan_in))."""
    hidden = input_dim // 2
    k1, k2, k3, k4 = jax.random.split(key, 4)
    bound1 = 1.0 / (input_dim ** 0.5)
    bound2 = 1.0 / (hidden ** 0.5)
    w1 = jax.random.uniform(k1, (input_dim, hidden), dtype, -bound1, bound1)
    b1 = jax.random.uniform(k2, (1, hidden), dtype, -bound1, bound1)
    w2 = jax.random.uniform(k3, (hidden, output_dim), dtype, -bound2, bound2)
    b2 = jax.random.uniform(k4, (1, output_dim), dtype, -bound2, bound2)
    return w1, b1, w2, b2


def _reference(x, w1, b1, w2, b2):
    # Pure-JAX f32 reference (same semantics as the PyTorch module).
    return jnp.maximum(x @ w1 + b1.reshape(1, -1), 0.0) @ w2 + b2.reshape(1, -1)


if __name__ == "__main__":
    key = jax.random.PRNGKey(0)

    # --- small shape matching the module spec: batch=8, input_dim=32, output_dim=16 ---
    kx, kp, key = jax.random.split(key, 3)
    batch, input_dim, output_dim = 8, 32, 16
    x = jax.random.normal(kx, (batch, input_dim), dtype=jnp.float32)
    w1, b1, w2, b2 = init_params(kp, input_dim, output_dim)
    params = prepare_params(w1, b1, w2, b2)          # one-time cast/reshape (not per call)

    out = jax.block_until_ready(attention_mlp(x, *params))
    ref = _reference(x, w1, b1, w2, b2)
    assert out.shape == (batch, output_dim)
    # bf16 weights/activations/output vs f32 reference -> mixed-precision tolerance.
    assert jnp.allclose(out.astype(jnp.float32), ref, atol=4e-2, rtol=4e-2)

    # --- larger, non-aligned batch/features to exercise multi-tile grid + masked edges ---
    kx2, kp2 = jax.random.split(key)
    batch2, input_dim2, output_dim2 = 1000, 96, 40
    x2 = jax.random.normal(kx2, (batch2, input_dim2), dtype=jnp.float32)
    p2_raw = init_params(kp2, input_dim2, output_dim2)
    p2 = prepare_params(*p2_raw)

    out2 = jax.block_until_ready(attention_mlp(x2, *p2, batch_tile=256))
    ref2 = _reference(x2, *p2_raw)
    assert out2.shape == (batch2, output_dim2)
    assert jnp.allclose(out2.astype(jnp.float32), ref2, atol=4e-2, rtol=4e-2)

    print("KERNEL_OK")
</pallas_src>

<mosaic_0001>
module attributes {stable_mosaic.version = 11 : i64} {
  func.func @_mlp_kernel(%arg0: i32, %arg1: memref<8x32xf32, #tpu.memory_space<vmem>>, %arg2: memref<32x16xbf16, #tpu.memory_space<vmem>>, %arg3: memref<1x16xf32, #tpu.memory_space<vmem>>, %arg4: memref<16x16xbf16, #tpu.memory_space<vmem>>, %arg5: memref<1x16xf32, #tpu.memory_space<vmem>>, %arg6: memref<8x16xbf16, #tpu.memory_space<vmem>>) attributes {dimension_semantics = [#tpu.dimension_semantics<parallel>], iteration_bounds = array<i64: 1>, scalar_prefetch = 0 : i64, scratch_operands = 0 : i64, tpu.core_type = #tpu.core_type<tc>, window_params = [{transform_indices = @transform_0, window_bounds = array<i64: 8, 32>}, {pipeline_mode = #tpu.pipeline_mode<synchronous>, transform_indices = @transform_1, window_bounds = array<i64: 32, 16>}, {pipeline_mode = #tpu.pipeline_mode<synchronous>, transform_indices = @transform_2, window_bounds = array<i64: 1, 16>}, {pipeline_mode = #tpu.pipeline_mode<synchronous>, transform_indices = @transform_3, window_bounds = array<i64: 16, 16>}, {pipeline_mode = #tpu.pipeline_mode<synchronous>, transform_indices = @transform_4, window_bounds = array<i64: 1, 16>}, {transform_indices = @transform_5, window_bounds = array<i64: 8, 16>}]} {
    %c0 = arith.constant 0 : index
    %c0_0 = arith.constant 0 : index
    %0 = vector.load %arg1[%c0, %c0_0] : memref<8x32xf32, #tpu.memory_space<vmem>>, vector<8x32xf32>
    %1 = arith.truncf %0 : vector<8x32xf32> to vector<8x32xbf16>
    %c0_1 = arith.constant 0 : index
    %c0_2 = arith.constant 0 : index
    %2 = vector.load %arg2[%c0_1, %c0_2] : memref<32x16xbf16, #tpu.memory_space<vmem>>, vector<32x16xbf16>
    %cst = arith.constant dense<0.000000e+00> : vector<8x16xf32>
    %3 = tpu.matmul %1, %2, %cst {dimension_numbers = #tpu.dot_dimension_numbers<[1], [0], [0], [1], [0, 0, 1, 1], [], []>} : vector<8x32xbf16>, vector<32x16xbf16>, vector<8x16xf32> -> vector<8x16xf32>
    %c0_3 = arith.constant 0 : index
    %c0_4 = arith.constant 0 : index
    %4 = vector.load %arg3[%c0_3, %c0_4] : memref<1x16xf32, #tpu.memory_space<vmem>>, vector<1x16xf32>
    %5 = vector.broadcast %4 : vector<1x16xf32> to vector<8x16xf32>
    %6 = arith.addf %3, %5 : vector<8x16xf32>
    %cst_5 = arith.constant 0.000000e+00 : f32
    %7 = vector.broadcast %cst_5 : f32 to vector<8x16xf32>
    %8 = arith.maximumf %6, %7 : vector<8x16xf32>
    %9 = arith.truncf %8 : vector<8x16xf32> to vector<8x16xbf16>
    %c0_6 = arith.constant 0 : index
    %c0_7 = arith.constant 0 : index
    %10 = vector.load %arg4[%c0_6, %c0_7] : memref<16x16xbf16, #tpu.memory_space<vmem>>, vector<16x16xbf16>
    %cst_8 = arith.constant dense<0.000000e+00> : vector<8x16xf32>
    %11 = tpu.matmul %9, %10, %cst_8 {dimension_numbers = #tpu.dot_dimension_numbers<[1], [0], [0], [1], [0, 0, 1, 1], [], []>} : vector<8x16xbf16>, vector<16x16xbf16>, vector<8x16xf32> -> vector<8x16xf32>
    %c0_9 = arith.constant 0 : index
    %c0_10 = arith.constant 0 : index
    %12 = vector.load %arg5[%c0_9, %c0_10] : memref<1x16xf32, #tpu.memory_space<vmem>>, vector<1x16xf32>
    %13 = vector.broadcast %12 : vector<1x16xf32> to vector<8x16xf32>
    %14 = arith.addf %11, %13 : vector<8x16xf32>
    %15 = arith.truncf %14 : vector<8x16xf32> to vector<8x16xbf16>
    %c0_11 = arith.constant 0 : index
    %c0_12 = arith.constant 0 : index
    %16 = vector.load %arg6[%c0_11, %c0_12] : memref<8x16xbf16, #tpu.memory_space<vmem>>, vector<8x16xbf16>
    tpu.vector_store %arg6[%c0_11, %c0_12], %15 {strides = array<i32>} : memref<8x16xbf16, #tpu.memory_space<vmem>>, vector<8x16xbf16>,
    return
  }
  func.func @transform_0(%arg0: i32) -> (i32, i32) {
    %c0_i32 = arith.constant 0 : i32
    %c0_i32_0 = arith.constant 0 : i32
    return %arg0, %c0_i32 : i32, i32
  }
  func.func @transform_1(%arg0: i32) -> (i32, i32) {
    %c0_i32 = arith.constant 0 : i32
    %c0_i32_0 = arith.constant 0 : i32
    %c0_i32_1 = arith.constant 0 : i32
    return %c0_i32, %c0_i32_0 : i32, i32
  }
  func.func @transform_2(%arg0: i32) -> (i32, i32) {
    %c0_i32 = arith.constant 0 : i32
    %c0_i32_0 = arith.constant 0 : i32
    %c0_i32_1 = arith.constant 0 : i32
    return %c0_i32, %c0_i32_0 : i32, i32
  }
  func.func @transform_3(%arg0: i32) -> (i32, i32) {
    %c0_i32 = arith.constant 0 : i32
    %c0_i32_0 = arith.constant 0 : i32
    %c0_i32_1 = arith.constant 0 : i32
    return %c0_i32, %c0_i32_0 : i32, i32
  }
  func.func @transform_4(%arg0: i32) -> (i32, i32) {
    %c0_i32 = arith.constant 0 : i32
    %c0_i32_0 = arith.constant 0 : i32
    %c0_i32_1 = arith.constant 0 : i32
    return %c0_i32, %c0_i32_0 : i32, i32
  }
  func.func @transform_5(%arg0: i32) -> (i32, i32) {
    %c0_i32 = arith.constant 0 : i32
    %c0_i32_0 = arith.constant 0 : i32
    return %arg0, %c0_i32 : i32, i32
  }
}

</mosaic_0001>

<llo_original>
// kernel: tpu_custom_call.1
$region0: #{tpu_custom_call.1}
  #allocation0 [shape = 'u32[]', space=smem, size = 0x4, offset = 0x4, fixed_abs, tag = 'smem constant byte address 0x4 - core index']
  #allocation1 [shape = 'u32[72,128]{1,0:T(1,128)}', space=vmem, size = 0x9000, scoped, tag = 'internal scratch']
  %s0 = inlined_call_operand.vmem [shape: f32[8,32], index: 0, kind: input, shape index: {}]
  %s1 = inlined_call_operand.vmem [shape: bf16[32,16], index: 1, kind: input, shape index: {}]
  %s2 = inlined_call_operand.vmem [shape: f32[1,16], index: 2, kind: input, shape index: {}]
  %s3 = inlined_call_operand.vmem [shape: bf16[16,16], index: 3, kind: input, shape index: {}]
  %s4 = inlined_call_operand.vmem [shape: f32[1,16], index: 4, kind: input, shape index: {}]
  %s5 = inlined_call_operand.hbm [shape: bf16[8,16], index: 5, kind: output, shape index: {}]
  %s6 = sld [smem:[#allocation0]]
  $region30: #{tpu_custom_call.1} parent=0
    _
  %s8 = ssub.s32 1, %s6
  %s9 = scalar_select 0, %s8, %s6
  $region1: #{tpu_custom_call.1} parent=0
    #allocation2 [shape = 'u8[2048]{0}', space=vmem, size = 0x800, scoped, tag = 'output window, operand 0, single buffered']
    #allocation3 [shape = 's32[1]{0}', space=sflag, size = 0x4, scoped, tag = 'scoped memory for tpu_custom_call.1']
    %10 = vsyncpa [#allocation3], 0
    // Predicated region
    $region2: #{tpu_custom_call.1} parent=1 // pred_check
      _
    $region3: #{tpu_custom_call.1} parent=1 // pred_check_branch
      %12 = sbr.rel (0) target = $region5
    $region4: #{tpu_custom_call.1} parent=1 // pred_region
      _
    $region5: #{tpu_custom_call.1} parent=1 // pred_fallthru
      _
    // Predicated region
    $region6: #{tpu_custom_call.1} parent=1 // pred_check
      _
    $region7: #{tpu_custom_call.1} parent=1 // pred_check_branch
      %14 = sbr.rel (0) target = $region9
    $region8: #{tpu_custom_call.1} parent=1 // pred_region
      _
    $region9: #{tpu_custom_call.1} parent=1 // pred_fallthru
      _
    // Predicated region
    $region10: #{tpu_custom_call.1} parent=1 // pred_check
      _
    $region11: #{tpu_custom_call.1} parent=1 // pred_check_branch
      %16 = sbr.rel (0) target = $region13
    $region12: #{tpu_custom_call.1} parent=1 // pred_region
      _
    $region13: #{tpu_custom_call.1} parent=1 // pred_fallthru
      _
    // Predicated region
    $region14: #{tpu_custom_call.1} parent=1 // pred_check
      _
    $region15: #{tpu_custom_call.1} parent=1 // pred_check_branch
      %18 = sbr.rel (0) target = $region17
    $region16: #{tpu_custom_call.1} parent=1 // pred_region
      _
    $region17: #{tpu_custom_call.1} parent=1 // pred_fallthru
      _
    // Predicated region
    $region18: #{tpu_custom_call.1} parent=1 // pred_check
      _
    $region19: #{tpu_custom_call.1} parent=1 // pred_check_branch
      %20 = sbr.rel (0) target = $region21
    $region20: #{tpu_custom_call.1} parent=1 // pred_region
      _
    $region21: #{tpu_custom_call.1} parent=1 // pred_fallthru
      _
    %v22 = vld [vmem:[%s0] sm:$0xff]
    %v23 = vpack.c.bf16 %v22, %v22
    %v24 = vld [vmem:[%s1] sm:$0xf]
    %v25 = vld [vmem:[%s1 + $0x4] sm:$0xf]
    %v26 = vld [vmem:[%s1 + $0x8] sm:$0xf]
    %v27 = vld [vmem:[%s1 + $0xc] sm:$0xf]
    %v28 = vld [vmem:[%s2] sm:$0x1]
    %v30 = vperm.slane %v28, 0
    %v36 = vunpack.c.l.b16 %v24
    %v37 = vunpack.c.l.b16 %v25
    %v38 = vunpack.c.l.b16 %v26
    %v39 = vunpack.c.l.b16 %v27
    %v40 = vpack.c.b16 %v37, %v36
    %v41 = vpack.c.b16 %v39, %v38
    %vm44 = vcmask 261120
    %v46 = vsel %vm44, %v23, 0
    %48 = vmatpush.bf16.msra.mxu0 0
    %49 = vmatpush.bf16.msra.mxu0 0
    %50 = vmatpush.bf16.msra.mxu0 0
    %51 = vmatpush.bf16.msra.mxu0 0
    %52 = vmatpush.bf16.msra.mxu0 0
    %53 = vmatpush.bf16.msra.mxu0 0
    %54 = vmatpush.bf16.msra.mxu0 %v41
    %55 = vmatpush.bf16.msra.mxu0 %v40
    %56 = vmatmul.bf16.gmra.mxu0 %v46
    %v57 = vpop.f32.mrf.mxu0
    %v58 = vadd.f32 %v30, %v57
    %v59 = vpop.f32.mrf.mxu0
    %60 = vdwg.mxu0
    %v61 = vmax.f32 %v58, 0.0
    %v62 = vpack.c.bf16 %v61, %v61
    %v63 = vld [vmem:[%s3] sm:$0xf]
    %v64 = vld [vmem:[%s3 + $0x4] sm:$0xf]
    %v65 = vld [vmem:[%s4] sm:$0x1]
    %v67 = vperm.slane %v65, 0
    %v71 = vunpack.c.l.b16 %v63
    %v72 = vunpack.c.l.b16 %v64
    %v73 = vpack.c.b16 %v72, %v71
    %vm75 = vcmask 130048
    %v77 = vsel %vm75, %v62, 0
    %79 = vmatpush.bf16.msra.mxu0 0
    %80 = vmatpush.bf16.msra.mxu0 0
    %81 = vmatpush.bf16.msra.mxu0 0
    %82 = vmatpush.bf16.msra.mxu0 0
    %83 = vmatpush.bf16.msra.mxu0 0
    %84 = vmatpush.bf16.msra.mxu0 0
    %85 = vmatpush.bf16.msra.mxu0 0
    %86 = vmatpush.bf16.msra.mxu0 %v73
    %87 = vmatmul.bf16.gmra.mxu0 %v77
    %v88 = vpop.f32.mrf.mxu0
    %v89 = vadd.f32 %v67, %v88
    %v90 = vpop.f32.mrf.mxu0
    %91 = vdwg.mxu0
    %v92 = vpack.c.bf16 %v89, %v89
    %vm93 = vcmask 125952
    %94 = vst.msk [vmem:[#allocation2] sm:$0xf] %vm93, %v92
    // Predicated region
    $region22: #{tpu_custom_call.1} parent=1 // pred_check
      _
    $region23: #{tpu_custom_call.1} parent=1 // pred_check_branch
      %96 = sbr.rel (0) target = $region25
    $region24: #{tpu_custom_call.1} parent=1 // pred_region
      %98 = vsyncadd [#allocation3], 0
      %s100 = sshll.u32 [#allocation2], 4
      %s101 = int_to_ptr.vmem [resolvable:$true] %s100
      %s102 = sshll.u32 %s5, 4
      %s103 = int_to_ptr.hbm [resolvable:$true] %s102
      %105 = dma.vmem_to_hbm [thread:$0]  %s101, 64, %s103, [#allocation3]
    $region25: #{tpu_custom_call.1} parent=1 // pred_fallthru
      _
    // Predicated region
    $region26: #{tpu_custom_call.1} parent=1 // pred_check
      _
    $region27: #{tpu_custom_call.1} parent=1 // pred_check_branch
      %107 = sbr.rel (0) target = $region29
    $region28: #{tpu_custom_call.1} parent=1 // pred_region
      %109 = dma.done [#allocation3], 64
    $region29: #{tpu_custom_call.1} parent=1 // pred_fallthru
      _
    %110 = vsyncpa [#allocation3], 1

</llo_original>
